<compile_context>
chip_gen: v6e
topology: v6e:2x2x1
jax: 0.10.0
libtpu: 0.0.40
codegen_flags: <defaults>
</compile_context>

<pallas_src>
import functools

import jax
import jax.numpy as jnp
from jax.experimental import pallas as pl
from jax.experimental.pallas import tpu as pltpu

_LANE = 128


def _round_up(x: int, m: int) -> int:
    return ((x + m - 1) // m) * m


def _vmem_capacity_bytes() -> int:
    try:
        return int(pltpu.get_tpu_info().vmem_capacity_bytes)
    except Exception:
        return 64 * 1024 * 1024  # conservative (v7x per-TensorCore size)


def _vmem_budget_and_limit() -> tuple[int, int]:
    cap = _vmem_capacity_bytes()
    if cap >= 100 * 1024 * 1024:
        # v5e / v6e (128 MiB physical VMEM): let TM grow toward 512-1024 rows.
        return 56 * 1024 * 1024, 96 * 1024 * 1024
    # v7x (64 MiB per TensorCore, duplicated per core under megacore) or unknown.
    return 24 * 1024 * 1024, 32 * 1024 * 1024


def _choose_tm(B, D, C, c_pad, x_bytes, w_bytes, out_bytes, w_buffers, budget):
    """Pick the batch tile so resident W + pipelined tiles + temporaries fit VMEM."""
    single_resident = D * c_pad * w_bytes + c_pad * 4
    if single_resident > budget:
        raise NotImplementedError(
            "Resident W^T (%.1f MiB) exceeds the %.1f MiB VMEM budget; this "
            "kernel needs a class-/K-tiled streaming-logsumexp variant for "
            "this size (see TODO)."
            % (single_resident / 2**20, budget / 2**20))
    resident = w_buffers * single_resident
    # Per batch row of live VMEM:
    #   2x (double-buffered) x tile + 2x out tile
    #   + ~3 f32 temporaries of width Cp (logits, exp(logits-m), logits-lse).
    per_row = 2 * D * x_bytes + 2 * C * out_bytes + 3 * c_pad * 4
    avail = budget - resident
    if avail < 16 * per_row:
        # Resident double-buffering alone eats the budget; assume the compiler
        # keeps one live copy of the constant-index block and use that.
        avail = budget - single_resident
    tm = avail // max(per_row, 1)
    tm = int(min(tm, 1024))
    if tm >= B:
        return B                      # single full-extent tile
    if tm >= 256:
        tm = (tm // 256) * 256        # clean MXU tiling on v6e/v7x (fine on v5e)
    elif tm >= 128:
        tm = 128
    else:
        tm = max((tm // 16) * 16, 16)  # sublane-pack aligned even for bf16 x
    return tm


def linear_logsoftmax_kernel(x_ref, w_ref, b_ref, o_ref, *, nclass, compute_dtype):
    # x_ref: (TM, D), w_ref: (D, Cp), b_ref: (1, Cp) f32, o_ref: (TM, C)
    x = x_ref[...]
    if compute_dtype is not None and x.dtype != compute_dtype:
        x = x.astype(compute_dtype)           # feed the MXU bf16 operands if asked
    logits = jnp.dot(x, w_ref[...], preferred_element_type=jnp.float32)
    logits = logits + b_ref[...]              # (TM, Cp), f32

    # Numerically stable log-softmax over the class dim.
    # max/sum -> XLU, exp/log -> EUP (off the VPU critical path).
    m = jnp.max(logits, axis=-1, keepdims=True)
    s = jnp.sum(jnp.exp(logits - m), axis=-1, keepdims=True)
    lse = m + jnp.log(s)
    out = (logits - lse).astype(o_ref.dtype)
    # Store only the real classes: the output array is unpadded (B, C), so no
    # post-kernel slice / extra HBM round trip is needed.
    o_ref[...] = out[:, :nclass]


@functools.partial(
    jax.jit,
    static_argnames=("nclass", "out_dtype", "compute_dtype", "single_buffer_resident"),
)
def _impl(x, w_t, b2, *, nclass, out_dtype, compute_dtype, single_buffer_resident):
    B, D = x.shape
    c_pad = w_t.shape[1]
    C = nclass

    budget, vmem_limit = _vmem_budget_and_limit()
    tm = _choose_tm(
        B, D, C, c_pad,
        x_bytes=x.dtype.itemsize,
        w_bytes=w_t.dtype.itemsize,
        out_bytes=jnp.dtype(out_dtype).itemsize,
        w_buffers=1 if single_buffer_resident else 2,
        budget=budget,
    )
    num_tiles = pl.cdiv(B, tm)

    # Constant-index (resident) operands only ever need one VMEM buffer.
    resident_kw = (
        dict(pipeline_mode=pl.Buffered(1)) if single_buffer_resident else {}
    )

    kernel = functools.partial(
        linear_logsoftmax_kernel, nclass=C, compute_dtype=compute_dtype)

    cost = pl.CostEstimate(
        flops=2 * B * D * c_pad,
        transcendentals=B * c_pad,
        bytes_accessed=(B * D * x.dtype.itemsize
                        + D * c_pad * w_t.dtype.itemsize
                        + c_pad * 4
                        + B * C * jnp.dtype(out_dtype).itemsize),
    )

    return pl.pallas_call(
        kernel,
        out_shape=jax.ShapeDtypeStruct((B, C), out_dtype),
        grid=(num_tiles,),
        in_specs=[
            pl.BlockSpec((tm, D), lambda i: (i, 0)),                    # x: batch-tiled
            pl.BlockSpec((D, c_pad), lambda i: (0, 0), **resident_kw),  # W^T resident
            pl.BlockSpec((1, c_pad), lambda i: (0, 0), **resident_kw),  # bias resident
        ],
        out_specs=pl.BlockSpec((tm, C), lambda i: (i, 0)),
        compiler_params=pltpu.CompilerParams(
            dimension_semantics=("parallel",),   # megacore split of the batch axis
            vmem_limit_bytes=vmem_limit,
        ),
        cost_estimate=cost,
    )(x, w_t, b2)


def prepare_params(weight, bias, *, compute_dtype=None):
    """Hoist the per-call transpose / pad / cast of the nn.Linear parameters.

    weight: (C, D) as in nn.Linear, bias: (C,).  Returns (w_t, b2) with
    w_t: (D, Cp) (zero-padded columns, optionally cast to compute_dtype) and
    b2: (1, Cp) f32 with -inf in the padded entries.
    """
    C, D = weight.shape
    c_pad = _round_up(C, _LANE)
    w_dtype = compute_dtype if compute_dtype is not None else weight.dtype
    w_t = weight.T.astype(w_dtype)                       # (D, C)
    b = bias
    if c_pad != C:
        w_t = jnp.pad(w_t, ((0, 0), (0, c_pad - C)))     # zero columns
        b = jnp.pad(b, (0, c_pad - C), constant_values=-jnp.inf)
    b2 = b.reshape(1, c_pad).astype(jnp.float32)
    return w_t, b2


_single_buffer_ok = True  # flipped off if pl.Buffered(1) is rejected by this JAX


def linear_logsoftmax_prepared(x, w_t, b2, nclass, *,
                               out_dtype=jnp.float32, compute_dtype=None):
    """Hot path: x (B, D) with pre-prepared (w_t, b2) from prepare_params()."""
    global _single_buffer_ok
    if _single_buffer_ok:
        try:
            return _impl(x, w_t, b2, nclass=nclass, out_dtype=out_dtype,
                         compute_dtype=compute_dtype, single_buffer_resident=True)
        except NotImplementedError:
            raise
        except Exception:
            # pipeline_mode=pl.Buffered(1) not supported here; fall back to the
            # default (double-buffered) resident operands.
            _single_buffer_ok = False
    return _impl(x, w_t, b2, nclass=nclass, out_dtype=out_dtype,
                 compute_dtype=compute_dtype, single_buffer_resident=False)


def linear_logsoftmax(x, weight, bias, *, out_dtype=jnp.float32, compute_dtype=None):
    """Convenience wrapper: x (B, D), weight (C, D), bias (C,) -> (B, C) log-probs."""
    w_t, b2 = prepare_params(weight, bias, compute_dtype=compute_dtype)
    return linear_logsoftmax_prepared(x, w_t, b2, weight.shape[0],
                                      out_dtype=out_dtype, compute_dtype=compute_dtype)


if __name__ == "__main__":
    key = jax.random.PRNGKey(0)
    k_x, k_w, k_b = jax.random.split(key, 3)

    batch = 8
    input_dim = 32
    nclass = 16

    x = jax.random.normal(k_x, (batch, input_dim), dtype=jnp.float32)
    # Deterministic init mimicking nn.Linear's uniform(-1/sqrt(D), 1/sqrt(D)).
    bound = 1.0 / jnp.sqrt(jnp.float32(input_dim))
    weight = jax.random.uniform(k_w, (nclass, input_dim), minval=-bound,
                                maxval=bound, dtype=jnp.float32)
    bias = jax.random.uniform(k_b, (nclass,), minval=-bound, maxval=bound,
                              dtype=jnp.float32)

    # Reference in plain JAX.
    ref = jax.nn.log_softmax(x @ weight.T + bias, axis=1)

    # Full-precision path (matches the PyTorch reference semantics).
    out = jax.block_until_ready(linear_logsoftmax(x, weight, bias))
    assert out.shape == (batch, nclass)
    assert out.dtype == jnp.float32
    assert jnp.allclose(out, ref, atol=1e-5, rtol=1e-5), "f32 path mismatch"

    # Hoisted-parameter hot path: transpose/pad done once, reused per call.
    w_t, b2 = prepare_params(weight, bias)
    out_p = jax.block_until_ready(linear_logsoftmax_prepared(x, w_t, b2, nclass))
    assert jnp.allclose(out_p, ref, atol=1e-5, rtol=1e-5), "prepared path mismatch"

    # Optional bf16-MXU fast path (gated behind compute_dtype; looser tolerance).
    out_bf = jax.block_until_ready(
        linear_logsoftmax(x, weight, bias, compute_dtype=jnp.bfloat16))
    assert out_bf.shape == (batch, nclass)
    assert jnp.allclose(out_bf, ref, atol=1e-1, rtol=1e-2), "bf16 path mismatch"

    print("KERNEL_OK")
</pallas_src>

<mosaic_0001>
module attributes {stable_mosaic.version = 11 : i64} {
  func.func @linear_logsoftmax_kernel(%arg0: i32, %arg1: memref<8x32xf32, #tpu.memory_space<vmem>>, %arg2: memref<32x128xf32, #tpu.memory_space<vmem>>, %arg3: memref<1x128xf32, #tpu.memory_space<vmem>>, %arg4: memref<8x16xf32, #tpu.memory_space<vmem>>) attributes {dimension_semantics = [#tpu.dimension_semantics<parallel>], iteration_bounds = array<i64: 1>, scalar_prefetch = 0 : i64, scratch_operands = 0 : i64, tpu.core_type = #tpu.core_type<tc>, window_params = [{transform_indices = @transform_0, window_bounds = array<i64: 8, 32>}, {pipeline_mode = #tpu.pipeline_mode<synchronous>, transform_indices = @transform_1, window_bounds = array<i64: 32, 128>}, {pipeline_mode = #tpu.pipeline_mode<synchronous>, transform_indices = @transform_2, window_bounds = array<i64: 1, 128>}, {transform_indices = @transform_3, window_bounds = array<i64: 8, 16>}]} {
    %c0 = arith.constant 0 : index
    %c0_0 = arith.constant 0 : index
    %0 = vector.load %arg1[%c0, %c0_0] : memref<8x32xf32, #tpu.memory_space<vmem>>, vector<8x32xf32>
    %c0_1 = arith.constant 0 : index
    %c0_2 = arith.constant 0 : index
    %1 = vector.load %arg2[%c0_1, %c0_2] : memref<32x128xf32, #tpu.memory_space<vmem>>, vector<32x128xf32>
    %cst = arith.constant dense<0.000000e+00> : vector<8x128xf32>
    %2 = tpu.matmul %0, %1, %cst {dimension_numbers = #tpu.dot_dimension_numbers<[1], [0], [0], [1], [0, 0, 1, 1], [], []>} : vector<8x32xf32>, vector<32x128xf32>, vector<8x128xf32> -> vector<8x128xf32>
    %c0_3 = arith.constant 0 : index
    %c0_4 = arith.constant 0 : index
    %3 = vector.load %arg3[%c0_3, %c0_4] : memref<1x128xf32, #tpu.memory_space<vmem>>, vector<1x128xf32>
    %4 = vector.broadcast %3 : vector<1x128xf32> to vector<8x128xf32>
    %5 = arith.addf %2, %4 : vector<8x128xf32>
    %cst_5 = arith.constant dense<0xFF800000> : vector<8xf32>
    %6 = vector.multi_reduction <maximumf>, %5, %cst_5 [1] : vector<8x128xf32> to vector<8xf32>
    %7 = vector.shape_cast %6 : vector<8xf32> to vector<8x1xf32>
    %8 = vector.broadcast %7 : vector<8x1xf32> to vector<8x128xf32>
    %9 = arith.subf %5, %8 : vector<8x128xf32>
    %10 = math.exp %9 : vector<8x128xf32>
    %cst_6 = arith.constant dense<0.000000e+00> : vector<8xf32>
    %11 = vector.multi_reduction <add>, %10, %cst_6 [1] : vector<8x128xf32> to vector<8xf32>
    %12 = vector.shape_cast %11 : vector<8xf32> to vector<8x1xf32>
    %13 = math.log %12 : vector<8x1xf32>
    %14 = arith.addf %7, %13 : vector<8x1xf32>
    %15 = vector.broadcast %14 : vector<8x1xf32> to vector<8x128xf32>
    %16 = arith.subf %5, %15 : vector<8x128xf32>
    %17 = vector.extract_strided_slice %16 {offsets = [0, 0], sizes = [8, 16], strides = [1, 1]} : vector<8x128xf32> to vector<8x16xf32>
    %c0_7 = arith.constant 0 : index
    %c0_8 = arith.constant 0 : index
    %18 = vector.load %arg4[%c0_7, %c0_8] : memref<8x16xf32, #tpu.memory_space<vmem>>, vector<8x16xf32>
    tpu.vector_store %arg4[%c0_7, %c0_8], %17 {strides = array<i32>} : memref<8x16xf32, #tpu.memory_space<vmem>>, vector<8x16xf32>,
    return
  }
  func.func @transform_0(%arg0: i32) -> (i32, i32) {
    %c0_i32 = arith.constant 0 : i32
    %c0_i32_0 = arith.constant 0 : i32
    return %arg0, %c0_i32 : i32, i32
  }
  func.func @transform_1(%arg0: i32) -> (i32, i32) {
    %c0_i32 = arith.constant 0 : i32
    %c0_i32_0 = arith.constant 0 : i32
    %c0_i32_1 = arith.constant 0 : i32
    return %c0_i32, %c0_i32_0 : i32, i32
  }
  func.func @transform_2(%arg0: i32) -> (i32, i32) {
    %c0_i32 = arith.constant 0 : i32
    %c0_i32_0 = arith.constant 0 : i32
    %c0_i32_1 = arith.constant 0 : i32
    return %c0_i32, %c0_i32_0 : i32, i32
  }
  func.func @transform_3(%arg0: i32) -> (i32, i32) {
    %c0_i32 = arith.constant 0 : i32
    %c0_i32_0 = arith.constant 0 : i32
    return %arg0, %c0_i32 : i32, i32
  }
}

module attributes {stable_mosaic.version = 11 : i64} {
  func.func @linear_logsoftmax_kernel(%arg0: i32, %arg1: memref<8x32xf32, #tpu.memory_space<vmem>>, %arg2: memref<32x128xf32, #tpu.memory_space<vmem>>, %arg3: memref<1x128xf32, #tpu.memory_space<vmem>>, %arg4: memref<8x16xf32, #tpu.memory_space<vmem>>) attributes {dimension_semantics = [#tpu.dimension_semantics<parallel>], iteration_bounds = array<i64: 1>, scalar_prefetch = 0 : i64, scratch_operands = 0 : i64, tpu.core_type = #tpu.core_type<tc>, window_params = [{transform_indices = @transform_0, window_bounds = array<i64: 8, 32>}, {pipeline_mode = #tpu.pipeline_mode<synchronous>, transform_indices = @transform_1, window_bounds = array<i64: 32, 128>}, {pipeline_mode = #tpu.pipeline_mode<synchronous>, transform_indices = @transform_2, window_bounds = array<i64: 1, 128>}, {transform_indices = @transform_3, window_bounds = array<i64: 8, 16>}]} {
    %c0 = arith.constant 0 : index
    %c0_0 = arith.constant 0 : index
    %0 = vector.load %arg1[%c0, %c0_0] : memref<8x32xf32, #tpu.memory_space<vmem>>, vector<8x32xf32>
    %c0_1 = arith.constant 0 : index
    %c0_2 = arith.constant 0 : index
    %1 = vector.load %arg2[%c0_1, %c0_2] : memref<32x128xf32, #tpu.memory_space<vmem>>, vector<32x128xf32>
    %cst = arith.constant dense<0.000000e+00> : vector<8x128xf32>
    %2 = tpu.matmul %0, %1, %cst {dimension_numbers = #tpu.dot_dimension_numbers<[1], [0], [0], [1], [0, 0, 1, 1], [], []>} : vector<8x32xf32>, vector<32x128xf32>, vector<8x128xf32> -> vector<8x128xf32>
    %c0_3 = arith.constant 0 : index
    %c0_4 = arith.constant 0 : index
    %3 = vector.load %arg3[%c0_3, %c0_4] : memref<1x128xf32, #tpu.memory_space<vmem>>, vector<1x128xf32>
    %4 = vector.broadcast %3 : vector<1x128xf32> to vector<8x128xf32>
    %5 = arith.addf %2, %4 : vector<8x128xf32>
    %cst_5 = arith.constant dense<0xFF800000> : vector<8xf32>
    %6 = vector.multi_reduction <maximumf>, %5, %cst_5 [1] : vector<8x128xf32> to vector<8xf32>
    %7 = vector.shape_cast %6 : vector<8xf32> to vector<8x1xf32>
    %8 = vector.broadcast %7 : vector<8x1xf32> to vector<8x128xf32>
    %9 = arith.subf %5, %8 : vector<8x128xf32>
    %10 = math.exp %9 : vector<8x128xf32>
    %cst_6 = arith.constant dense<0.000000e+00> : vector<8xf32>
    %11 = vector.multi_reduction <add>, %10, %cst_6 [1] : vector<8x128xf32> to vector<8xf32>
    %12 = vector.shape_cast %11 : vector<8xf32> to vector<8x1xf32>
    %13 = math.log %12 : vector<8x1xf32>
    %14 = arith.addf %7, %13 : vector<8x1xf32>
    %15 = vector.broadcast %14 : vector<8x1xf32> to vector<8x128xf32>
    %16 = arith.subf %5, %15 : vector<8x128xf32>
    %17 = vector.extract_strided_slice %16 {offsets = [0, 0], sizes = [8, 16], strides = [1, 1]} : vector<8x128xf32> to vector<8x16xf32>
    %c0_7 = arith.constant 0 : index
    %c0_8 = arith.constant 0 : index
    %18 = vector.load %arg4[%c0_7, %c0_8] : memref<8x16xf32, #tpu.memory_space<vmem>>, vector<8x16xf32>
    tpu.vector_store %arg4[%c0_7, %c0_8], %17 {strides = array<i32>} : memref<8x16xf32, #tpu.memory_space<vmem>>, vector<8x16xf32>,
    return
  }
  func.func @transform_0(%arg0: i32) -> (i32, i32) {
    %c0_i32 = arith.constant 0 : i32
    %c0_i32_0 = arith.constant 0 : i32
    return %arg0, %c0_i32 : i32, i32
  }
  func.func @transform_1(%arg0: i32) -> (i32, i32) {
    %c0_i32 = arith.constant 0 : i32
    %c0_i32_0 = arith.constant 0 : i32
    %c0_i32_1 = arith.constant 0 : i32
    return %c0_i32, %c0_i32_0 : i32, i32
  }
  func.func @transform_2(%arg0: i32) -> (i32, i32) {
    %c0_i32 = arith.constant 0 : i32
    %c0_i32_0 = arith.constant 0 : i32
    %c0_i32_1 = arith.constant 0 : i32
    return %c0_i32, %c0_i32_0 : i32, i32
  }
  func.func @transform_3(%arg0: i32) -> (i32, i32) {
    %c0_i32 = arith.constant 0 : i32
    %c0_i32_0 = arith.constant 0 : i32
    return %arg0, %c0_i32 : i32, i32
  }
}

</mosaic_0001>

<llo_original>
// kernel: _impl.1
$region0: #{_impl.1}
  #allocation0 [shape = 'u32[]', space=smem, size = 0x4, offset = 0x4, fixed_abs, tag = 'smem constant byte address 0x4 - core index']
  #allocation1 [shape = 'u32[144,128]{1,0:T(1,128)}', space=vmem, size = 0x12000, scoped, tag = 'internal scratch']
  %s0 = inlined_call_operand.hbm [shape: f32[8,32], index: 0, kind: input, shape index: {}]
  %s1 = inlined_call_operand.hbm [shape: f32[32,128], index: 1, kind: input, shape index: {}]
  %s2 = inlined_call_operand.vmem [shape: f32[1,128], index: 2, kind: input, shape index: {}]
  %s3 = inlined_call_operand.hbm [shape: f32[8,16], index: 3, kind: output, shape index: {}]
  %s4 = sld [smem:[#allocation0]]
  $region30: #{_impl.1} parent=0
    _
  %s6 = ssub.s32 1, %s4
  %s7 = scalar_select 0, %s6, %s4
  $region1: #{_impl.1} parent=0
    #allocation2 [shape = 'u8[4096]{0}', space=vmem, size = 0x1000, scoped, tag = 'input window, operand 0, single buffered']
    #allocation3 [shape = 's32[1]{0}', space=sflag, size = 0x4, scoped, tag = 'scoped memory for _impl.1']
    #allocation4 [shape = 's32[1]{0}', space=sflag, size = 0x4, scoped, tag = 'scoped memory for _impl.1']
    #allocation5 [shape = 'u8[16384]{0}', space=vmem, size = 0x4000, scoped, tag = 'input window, operand 1, single buffered']
    #allocation6 [shape = 's32[1]{0}', space=sflag, size = 0x4, scoped, tag = 'scoped memory for _impl.1']
    #allocation7 [shape = 'u8[4096]{0}', space=vmem, size = 0x1000, scoped, tag = 'output window, operand 0, single buffered']
    %8 = vsyncpa [#allocation3], 0
    %9 = vsyncpa [#allocation6], 0
    %10 = vsyncpa [#allocation4], 0
    // Predicated region
    $region2: #{_impl.1} parent=1 // pred_check
      _
    $region3: #{_impl.1} parent=1 // pred_check_branch
      %12 = sbr.rel (0) target = $region5
    $region4: #{_impl.1} parent=1 // pred_region
      %s14 = ssub.s32 128, 128
      %15 = vsyncadd [#allocation3], %s14
      %s17 = sshll.u32 [#allocation2], 4
      %s18 = int_to_ptr.vmem [resolvable:$true] %s17
      %20 = dma.hbm_to_vmem [thread:$0]  %s0, 128, %s18, [#allocation3]
    $region5: #{_impl.1} parent=1 // pred_fallthru
      _
    // Predicated region
    $region6: #{_impl.1} parent=1 // pred_check
      _
    $region7: #{_impl.1} parent=1 // pred_check_branch
      %22 = sbr.rel (0) target = $region9
    $region8: #{_impl.1} parent=1 // pred_region
      %s24 = ssub.s32 512, 512
      %25 = vsyncadd [#allocation6], %s24
      %s26 = sshll.u32 [#allocation5], 4
      %s27 = int_to_ptr.vmem [resolvable:$true] %s26
      %32 = dma.hbm_to_vmem [thread:$0]  %s1, 512, %s27, [#allocation6], 128, 128, 8
    $region9: #{_impl.1} parent=1 // pred_fallthru
      _
    // Predicated region
    $region10: #{_impl.1} parent=1 // pred_check
      _
    $region11: #{_impl.1} parent=1 // pred_check_branch
      %34 = sbr.rel (0) target = $region13
    $region12: #{_impl.1} parent=1 // pred_region
      _
    $region13: #{_impl.1} parent=1 // pred_fallthru
      _
    // Predicated region
    $region14: #{_impl.1} parent=1 // pred_check
      _
    $region15: #{_impl.1} parent=1 // pred_check_branch
      %36 = sbr.rel (0) target = $region17
    $region16: #{_impl.1} parent=1 // pred_region
      %37 = dma.done [#allocation3], 128
    $region17: #{_impl.1} parent=1 // pred_fallthru
      _
    // Predicated region
    $region18: #{_impl.1} parent=1 // pred_check
      _
    $region19: #{_impl.1} parent=1 // pred_check_branch
      %39 = sbr.rel (0) target = $region21
    $region20: #{_impl.1} parent=1 // pred_region
      %40 = dma.done [#allocation6], 512
    $region21: #{_impl.1} parent=1 // pred_fallthru
      _
    %v41 = vld [vmem:[#allocation2] sm:$0xff]
    %v42 = vld [vmem:[#allocation5] sm:$0xff]
    %v43 = vld [vmem:[#allocation5 + $0x8] sm:$0xff]
    %v44 = vld [vmem:[#allocation5 + $0x10] sm:$0xff]
    %v45 = vld [vmem:[#allocation5 + $0x18] sm:$0xff]
    %v46 = vld [vmem:[%s2] sm:$0x1]
    %v48 = vlaneseq
    %v49 = vshrl.u32 %v48, 7
    %v50 = vsub.s32 0, %v49
    %v51 = vrot.slane %v46, %v50
    %vm53 = vcmask 261120
    %v55 = vsel %vm53, %v41, 0
    %57 = vmatprep.subr.mxu0 0.0
    %58 = vmatpush1.msra.mxu0 0.0
    %59 = vmatprep.subr.mxu0 0.0
    %60 = vmatpush1.msra.mxu0 0.0
    %61 = vmatprep.subr.mxu0 0.0
    %62 = vmatpush1.msra.mxu0 0.0
    %63 = vmatprep.subr.mxu0 0.0
    %64 = vmatpush1.msra.mxu0 0.0
    %65 = vmatprep.subr.mxu0 0.0
    %66 = vmatpush1.msra.mxu0 0.0
    %67 = vmatprep.subr.mxu0 0.0
    %68 = vmatpush1.msra.mxu0 0.0
    %69 = vmatprep.subr.mxu0 0.0
    %70 = vmatpush1.msra.mxu0 0.0
    %71 = vmatprep.subr.mxu0 0.0
    %72 = vmatpush1.msra.mxu0 0.0
    %73 = vmatprep.subr.mxu0 0.0
    %74 = vmatpush1.msra.mxu0 0.0
    %75 = vmatprep.subr.mxu0 0.0
    %76 = vmatpush1.msra.mxu0 0.0
    %77 = vmatprep.subr.mxu0 0.0
    %78 = vmatpush1.msra.mxu0 0.0
    %79 = vmatprep.subr.mxu0 0.0
    %80 = vmatpush1.msra.mxu0 0.0
    %81 = vmatprep.subr.mxu0 0.0
    %82 = vmatpush1.msra.mxu0 %v45
    %83 = vmatprep.subr.mxu0 0.0
    %84 = vmatpush1.msra.mxu0 %v44
    %85 = vmatprep.subr.mxu0 0.0
    %86 = vmatpush1.msra.mxu0 %v43
    %87 = vmatprep.subr.mxu0 0.0
    %88 = vmatpush1.msra.mxu0 %v42
    %89 = vmatprep.subr.mxu0 0.0
    %90 = vmatpush2.msra.mxu0 0.0
    %91 = vmatprep.subr.mxu0 0.0
    %92 = vmatpush2.msra.mxu0 0.0
    %93 = vmatprep.subr.mxu0 0.0
    %94 = vmatpush2.msra.mxu0 0.0
    %95 = vmatprep.subr.mxu0 0.0
    %96 = vmatpush2.msra.mxu0 0.0
    %97 = vmatprep.subr.mxu0 0.0
    %98 = vmatpush2.msra.mxu0 0.0
    %99 = vmatprep.subr.mxu0 0.0
    %100 = vmatpush2.msra.mxu0 0.0
    %101 = vmatprep.subr.mxu0 0.0
    %102 = vmatpush2.msra.mxu0 0.0
    %103 = vmatprep.subr.mxu0 0.0
    %104 = vmatpush2.msra.mxu0 0.0
    %105 = vmatprep.subr.mxu0 0.0
    %106 = vmatpush2.msra.mxu0 0.0
    %107 = vmatprep.subr.mxu0 0.0
    %108 = vmatpush2.msra.mxu0 0.0
    %109 = vmatprep.subr.mxu0 0.0
    %110 = vmatpush2.msra.mxu0 0.0
    %111 = vmatprep.subr.mxu0 0.0
    %112 = vmatpush2.msra.mxu0 0.0
    %113 = vmatprep.subr.mxu0 0.0
    %114 = vmatpush2.msra.mxu0 0.0
    %115 = vmatprep.subr.mxu0 0.0
    %116 = vmatpush2.msra.mxu0 0.0
    %117 = vmatprep.subr.mxu0 0.0
    %118 = vmatpush2.msra.mxu0 0.0
    %119 = vmatprep.subr.mxu0 0.0
    %120 = vmatpush2.msra.mxu0 0.0
    %121 = vmatprep.mubr.f32.mxu0 0.0
    %122 = vmatmul.mubr.f32.gmra.mxu0 %v55
    %v123 = vpop.f32.mrf.mxu0
    %v124 = vadd.f32 %v51, %v123
    %v125 = vpop.f32.mrf.mxu0
    %126 = vdwg.mxu0
    %127 = vmax.xlane.f32.xlu0 %v124
    %v128 = vpop.xlane.xlu0 %127
    %v129 = vsub.f32 %v124, %v128
    %v130 = vmul.f32 %v129, 1.442695
    %v131 = vpow.pop %v130
    %132 = vadd.xlane.f32.xlu0 %v131
    %v133 = vpop.xlane.xlu0 %132
    %v134 = vlog2.pop %v133
    %v135 = vmul.f32 %v134, 0.6931472
    %v136 = vadd.f32 %v128, %v135
    %v137 = vsub.f32 %v124, %v136
    %vm138 = vcmask 130048
    %139 = vst.msk [vmem:[#allocation7] sm:$0xff] %vm138, %v137
    // Predicated region
    $region22: #{_impl.1} parent=1 // pred_check
      _
    $region23: #{_impl.1} parent=1 // pred_check_branch
      %141 = sbr.rel (0) target = $region25
    $region24: #{_impl.1} parent=1 // pred_region
      %s143 = ssub.s32 128, 128
      %144 = vsyncadd [#allocation4], %s143
      %s146 = sshll.u32 [#allocation7], 4
      %s147 = int_to_ptr.vmem [resolvable:$true] %s146
      %149 = dma.vmem_to_hbm [thread:$0]  %s147, 128, %s3, [#allocation4]
    $region25: #{_impl.1} parent=1 // pred_fallthru
      _
    // Predicated region
    $region26: #{_impl.1} parent=1 // pred_check
      _
    $region27: #{_impl.1} parent=1 // pred_check_branch
      %151 = sbr.rel (0) target = $region29
    $region28: #{_impl.1} parent=1 // pred_region
      %152 = dma.done [#allocation4], 128
    $region29: #{_impl.1} parent=1 // pred_fallthru
      _
    %153 = vsyncpa [#allocation3], 1
    %154 = vsyncpa [#allocation6], 1
    %155 = vsyncpa [#allocation4], 1

// kernel: _impl.1
$region0: #{_impl.1}
  #allocation0 [shape = 'u32[]', space=smem, size = 0x4, offset = 0x4, fixed_abs, tag = 'smem constant byte address 0x4 - core index']
  #allocation1 [shape = 'u32[144,128]{1,0:T(1,128)}', space=vmem, size = 0x12000, scoped, tag = 'internal scratch']
  %s0 = inlined_call_operand.hbm [shape: f32[8,32], index: 0, kind: input, shape index: {}]
  %s1 = inlined_call_operand.hbm [shape: f32[32,128], index: 1, kind: input, shape index: {}]
  %s2 = inlined_call_operand.vmem [shape: f32[1,128], index: 2, kind: input, shape index: {}]
  %s3 = inlined_call_operand.hbm [shape: f32[8,16], index: 3, kind: output, shape index: {}]
  %s4 = sld [smem:[#allocation0]]
  $region30: #{_impl.1} parent=0
    _
  %s6 = ssub.s32 1, %s4
  %s7 = scalar_select 0, %s6, %s4
  $region1: #{_impl.1} parent=0
    #allocation2 [shape = 'u8[4096]{0}', space=vmem, size = 0x1000, scoped, tag = 'input window, operand 0, single buffered']
    #allocation3 [shape = 's32[1]{0}', space=sflag, size = 0x4, scoped, tag = 'scoped memory for _impl.1']
    #allocation4 [shape = 's32[1]{0}', space=sflag, size = 0x4, scoped, tag = 'scoped memory for _impl.1']
    #allocation5 [shape = 'u8[16384]{0}', space=vmem, size = 0x4000, scoped, tag = 'input window, operand 1, single buffered']
    #allocation6 [shape = 's32[1]{0}', space=sflag, size = 0x4, scoped, tag = 'scoped memory for _impl.1']
    #allocation7 [shape = 'u8[4096]{0}', space=vmem, size = 0x1000, scoped, tag = 'output window, operand 0, single buffered']
    %8 = vsyncpa [#allocation3], 0
    %9 = vsyncpa [#allocation6], 0
    %10 = vsyncpa [#allocation4], 0
    // Predicated region
    $region2: #{_impl.1} parent=1 // pred_check
      _
    $region3: #{_impl.1} parent=1 // pred_check_branch
      %12 = sbr.rel (0) target = $region5
    $region4: #{_impl.1} parent=1 // pred_region
      %s14 = ssub.s32 128, 128
      %15 = vsyncadd [#allocation3], %s14
      %s17 = sshll.u32 [#allocation2], 4
      %s18 = int_to_ptr.vmem [resolvable:$true] %s17
      %20 = dma.hbm_to_vmem [thread:$0]  %s0, 128, %s18, [#allocation3]
    $region5: #{_impl.1} parent=1 // pred_fallthru
      _
    // Predicated region
    $region6: #{_impl.1} parent=1 // pred_check
      _
    $region7: #{_impl.1} parent=1 // pred_check_branch
      %22 = sbr.rel (0) target = $region9
    $region8: #{_impl.1} parent=1 // pred_region
      %s24 = ssub.s32 512, 512
      %25 = vsyncadd [#allocation6], %s24
      %s26 = sshll.u32 [#allocation5], 4
      %s27 = int_to_ptr.vmem [resolvable:$true] %s26
      %32 = dma.hbm_to_vmem [thread:$0]  %s1, 512, %s27, [#allocation6], 128, 128, 8
    $region9: #{_impl.1} parent=1 // pred_fallthru
      _
    // Predicated region
    $region10: #{_impl.1} parent=1 // pred_check
      _
    $region11: #{_impl.1} parent=1 // pred_check_branch
      %34 = sbr.rel (0) target = $region13
    $region12: #{_impl.1} parent=1 // pred_region
      _
    $region13: #{_impl.1} parent=1 // pred_fallthru
      _
    // Predicated region
    $region14: #{_impl.1} parent=1 // pred_check
      _
    $region15: #{_impl.1} parent=1 // pred_check_branch
      %36 = sbr.rel (0) target = $region17
    $region16: #{_impl.1} parent=1 // pred_region
      %37 = dma.done [#allocation3], 128
    $region17: #{_impl.1} parent=1 // pred_fallthru
      _
    // Predicated region
    $region18: #{_impl.1} parent=1 // pred_check
      _
    $region19: #{_impl.1} parent=1 // pred_check_branch
      %39 = sbr.rel (0) target = $region21
    $region20: #{_impl.1} parent=1 // pred_region
      %40 = dma.done [#allocation6], 512
    $region21: #{_impl.1} parent=1 // pred_fallthru
      _
    %v41 = vld [vmem:[#allocation2] sm:$0xff]
    %v42 = vld [vmem:[#allocation5] sm:$0xff]
    %v43 = vld [vmem:[#allocation5 + $0x8] sm:$0xff]
    %v44 = vld [vmem:[#allocation5 + $0x10] sm:$0xff]
    %v45 = vld [vmem:[#allocation5 + $0x18] sm:$0xff]
    %v46 = vld [vmem:[%s2] sm:$0x1]
    %v48 = vlaneseq
    %v49 = vshrl.u32 %v48, 7
    %v50 = vsub.s32 0, %v49
    %v51 = vrot.slane %v46, %v50
    %vm53 = vcmask 261120
    %v55 = vsel %vm53, %v41, 0
    %57 = vmatprep.subr.mxu0 0.0
    %58 = vmatpush1.msra.mxu0 0.0
    %59 = vmatprep.subr.mxu0 0.0
    %60 = vmatpush1.msra.mxu0 0.0
    %61 = vmatprep.subr.mxu0 0.0
    %62 = vmatpush1.msra.mxu0 0.0
    %63 = vmatprep.subr.mxu0 0.0
    %64 = vmatpush1.msra.mxu0 0.0
    %65 = vmatprep.subr.mxu0 0.0
    %66 = vmatpush1.msra.mxu0 0.0
    %67 = vmatprep.subr.mxu0 0.0
    %68 = vmatpush1.msra.mxu0 0.0
    %69 = vmatprep.subr.mxu0 0.0
    %70 = vmatpush1.msra.mxu0 0.0
    %71 = vmatprep.subr.mxu0 0.0
    %72 = vmatpush1.msra.mxu0 0.0
    %73 = vmatprep.subr.mxu0 0.0
    %74 = vmatpush1.msra.mxu0 0.0
    %75 = vmatprep.subr.mxu0 0.0
    %76 = vmatpush1.msra.mxu0 0.0
    %77 = vmatprep.subr.mxu0 0.0
    %78 = vmatpush1.msra.mxu0 0.0
    %79 = vmatprep.subr.mxu0 0.0
    %80 = vmatpush1.msra.mxu0 0.0
    %81 = vmatprep.subr.mxu0 0.0
    %82 = vmatpush1.msra.mxu0 %v45
    %83 = vmatprep.subr.mxu0 0.0
    %84 = vmatpush1.msra.mxu0 %v44
    %85 = vmatprep.subr.mxu0 0.0
    %86 = vmatpush1.msra.mxu0 %v43
    %87 = vmatprep.subr.mxu0 0.0
    %88 = vmatpush1.msra.mxu0 %v42
    %89 = vmatprep.subr.mxu0 0.0
    %90 = vmatpush2.msra.mxu0 0.0
    %91 = vmatprep.subr.mxu0 0.0
    %92 = vmatpush2.msra.mxu0 0.0
    %93 = vmatprep.subr.mxu0 0.0
    %94 = vmatpush2.msra.mxu0 0.0
    %95 = vmatprep.subr.mxu0 0.0
    %96 = vmatpush2.msra.mxu0 0.0
    %97 = vmatprep.subr.mxu0 0.0
    %98 = vmatpush2.msra.mxu0 0.0
    %99 = vmatprep.subr.mxu0 0.0
    %100 = vmatpush2.msra.mxu0 0.0
    %101 = vmatprep.subr.mxu0 0.0
    %102 = vmatpush2.msra.mxu0 0.0
    %103 = vmatprep.subr.mxu0 0.0
    %104 = vmatpush2.msra.mxu0 0.0
    %105 = vmatprep.subr.mxu0 0.0
    %106 = vmatpush2.msra.mxu0 0.0
    %107 = vmatprep.subr.mxu0 0.0
    %108 = vmatpush2.msra.mxu0 0.0
    %109 = vmatprep.subr.mxu0 0.0
    %110 = vmatpush2.msra.mxu0 0.0
    %111 = vmatprep.subr.mxu0 0.0
    %112 = vmatpush2.msra.mxu0 0.0
    %113 = vmatprep.subr.mxu0 0.0
    %114 = vmatpush2.msra.mxu0 0.0
    %115 = vmatprep.subr.mxu0 0.0
    %116 = vmatpush2.msra.mxu0 0.0
    %117 = vmatprep.subr.mxu0 0.0
    %118 = vmatpush2.msra.mxu0 0.0
    %119 = vmatprep.subr.mxu0 0.0
    %120 = vmatpush2.msra.mxu0 0.0
    %121 = vmatprep.mubr.f32.mxu0 0.0
    %122 = vmatmul.mubr.f32.gmra.mxu0 %v55
    %v123 = vpop.f32.mrf.mxu0
    %v124 = vadd.f32 %v51, %v123
    %v125 = vpop.f32.mrf.mxu0
    %126 = vdwg.mxu0
    %127 = vmax.xlane.f32.xlu0 %v124
    %v128 = vpop.xlane.xlu0 %127
    %v129 = vsub.f32 %v124, %v128
    %v130 = vmul.f32 %v129, 1.442695
    %v131 = vpow.pop %v130
    %132 = vadd.xlane.f32.xlu0 %v131
    %v133 = vpop.xlane.xlu0 %132
    %v134 = vlog2.pop %v133
    %v135 = vmul.f32 %v134, 0.6931472
    %v136 = vadd.f32 %v128, %v135
    %v137 = vsub.f32 %v124, %v136
    %vm138 = vcmask 130048
    %139 = vst.msk [vmem:[#allocation7] sm:$0xff] %vm138, %v137
    // Predicated region
    $region22: #{_impl.1} parent=1 // pred_check
      _
    $region23: #{_impl.1} parent=1 // pred_check_branch
      %141 = sbr.rel (0) target = $region25
    $region24: #{_impl.1} parent=1 // pred_region
      %s143 = ssub.s32 128, 128
      %144 = vsyncadd [#allocation4], %s143
      %s146 = sshll.u32 [#allocation7], 4
      %s147 = int_to_ptr.vmem [resolvable:$true] %s146
      %149 = dma.vmem_to_hbm [thread:$0]  %s147, 128, %s3, [#allocation4]
    $region25: #{_impl.1} parent=1 // pred_fallthru
      _
    // Predicated region
    $region26: #{_impl.1} parent=1 // pred_check
      _
    $region27: #{_impl.1} parent=1 // pred_check_branch
      %151 = sbr.rel (0) target = $region29
    $region28: #{_impl.1} parent=1 // pred_region
      %152 = dma.done [#allocation4], 128
    $region29: #{_impl.1} parent=1 // pred_fallthru
      _
    %153 = vsyncpa [#allocation3], 1
    %154 = vsyncpa [#allocation6], 1
    %155 = vsyncpa [#allocation4], 1

</llo_original>
